<compile_context>
chip_gen: v7x
topology: tpu7x:2x2x1
jax: 0.10.0
libtpu: 0.0.40
codegen_flags: <defaults>
</compile_context>

<pallas_src>
import jax
import jax.numpy as jnp
import numpy as np
from jax.experimental import pallas as pl
from jax.experimental.pallas import tpu as pltpu

BN_EPS = 1e-5
_MAX_TILE_L = 8192   # lanes per block; footprint stays tiny even on v7x VMEM


def _pick_tile_l(L):
    """Largest multiple-of-128 tile that divides L (or full L if irregular)."""
    if L % 128 != 0:
        return L                      # full-dim block is always legal
    t = min(_MAX_TILE_L, L)
    t -= t % 128
    while L % t != 0:
        t -= 128
    return t


def _stats_kernel(w1_ref, b1_ref, x_ref, psum_ref):
    """Pass 1: lanewise partial sums of h and h^2 (global BN batch stats).

    w1_ref  : SMEM (F, C)  folded conv-1 weight
    b1_ref  : SMEM (F,)    conv-1 bias
    x_ref   : VMEM (1, C, TILE_L)
    psum_ref: VMEM (2F, TILE_L) resident accumulator
              rows [0, F)  -> sum of h, rows [F, 2F) -> sum of h^2
    """
    @pl.when(jnp.logical_and(pl.program_id(0) == 0, pl.program_id(1) == 0))
    def _():
        psum_ref[...] = jnp.zeros_like(psum_ref)

    x = x_ref[0]                                     # (C, TILE_L)
    n_feat, n_ch = w1_ref.shape

    h_rows = []
    for f in range(n_feat):
        acc = w1_ref[f, 0] * x[0:1, :] + b1_ref[f]
        for c in range(1, n_ch):
            acc = acc + w1_ref[f, c] * x[c:c + 1, :]
        h_rows.append(jnp.maximum(acc, 0.0))         # (1, TILE_L)

    upd = jnp.concatenate(h_rows + [h * h for h in h_rows], axis=0)
    psum_ref[...] += upd


def _apply_kernel(w1_ref, b1_ref, w2s_ref, b2e_ref, x_ref, out_ref):
    """Pass 2: conv1+ReLU, folded BN+conv2, softmax over points, weighting.

    w1_ref : SMEM (F, C)  folded conv-1 weight
    b1_ref : SMEM (F,)    conv-1 bias
    w2s_ref: SMEM (P, F)  conv-2 weight with BN scale folded in
    b2e_ref: SMEM (P,)    conv-2 bias with BN shift folded in
    x_ref  : VMEM (1, C, TILE_L)
    out_ref: VMEM (1, P, TILE_L)
    """
    x = x_ref[0]                                     # (C, TILE_L)
    n_feat, n_ch = w1_ref.shape
    n_pts = w2s_ref.shape[0]

    h_rows = []
    for f in range(n_feat):
        acc = w1_ref[f, 0] * x[0:1, :] + b1_ref[f]
        for c in range(1, n_ch):
            acc = acc + w1_ref[f, c] * x[c:c + 1, :]
        h_rows.append(jnp.maximum(acc, 0.0))         # (1, TILE_L)

    logit_rows = []
    for p in range(n_pts):
        lg = w2s_ref[p, 0] * h_rows[0] + b2e_ref[p]
        for f in range(1, n_feat):
            lg = lg + w2s_ref[p, f] * h_rows[f]
        logit_rows.append(lg)                        # (1, TILE_L)
    logits = jnp.concatenate(logit_rows, axis=0)     # (P, TILE_L)

    # softmax over the point axis (sublanes)
    m = jnp.max(logits, axis=0, keepdims=True)
    e = jnp.exp(logits - m)
    w = e * pl.reciprocal(jnp.sum(e, axis=0, keepdims=True), approx=False)

    out_ref[0] = x * w                               # val_flat * weights


@jax.jit
def interpolation_forward(distances, values, params):
    """JAX wrapper mirroring InterpolationLayer.forward."""
    w1, b1, gamma, beta, w2, b2 = params
    B = distances.shape[0]

    dist_flat = distances.reshape(distances.shape[:2] + (-1,))
    # Faithful to the PyTorch source: val_flat is also a view of *distances*.
    val_flat = distances.reshape(values.shape[:2] + (-1,))
    assert dist_flat.shape == val_flat.shape, (
        "original forward only type-checks when distances/values channel "
        "dims match")
    C, L = val_flat.shape[1], val_flat.shape[2]
    N = B * L
    TILE_L = _pick_tile_l(L)
    grid = (B, L // TILE_L)

    x = val_flat.astype(jnp.float32)                             # (B, C, L)

    Fn = w1.shape[0]
    P = w2.shape[0]
    # Fold cat([x, x]) into the conv-1 weight (val_flat == dist_flat).
    w1_eff = (w1[:, :C] + w1[:, C:]).astype(jnp.float32)         # (F, C)
    b1_f = b1.astype(jnp.float32)                                # (F,)

    smem = pl.BlockSpec(memory_space=pltpu.MemorySpace.SMEM)
    x_spec = pl.BlockSpec((1, C, TILE_L), lambda b, l: (b, 0, l))

    # ---- Pass 1: gridded reduction for training-mode BatchNorm statistics ----
    stats_cost = pl.CostEstimate(
        flops=int(N * Fn * (2 * C + 3)),
        transcendentals=0,
        bytes_accessed=int(4 * (C * N + 2 * Fn * TILE_L)))
    psum = pl.pallas_call(
        _stats_kernel,
        out_shape=jax.ShapeDtypeStruct((2 * Fn, TILE_L), jnp.float32),
        grid=grid,
        in_specs=[smem, smem, x_spec],
        out_specs=pl.BlockSpec((2 * Fn, TILE_L), lambda b, l: (0, 0)),
        compiler_params=pltpu.CompilerParams(
            dimension_semantics=("arbitrary", "arbitrary")),
        cost_estimate=stats_cost,
    )(w1_eff, b1_f, x)

    sum_h = jnp.sum(psum[:Fn], axis=1)                           # (F,)
    sum_h2 = jnp.sum(psum[Fn:], axis=1)                          # (F,)
    mean = sum_h / N
    var = jnp.maximum(sum_h2 / N - mean * mean, 0.0)             # biased var
    # TODO(synk): PyTorch BatchNorm1d running_mean/running_var momentum
    # buffer updates are stateful module side effects; not emitted here.
    scale = gamma.astype(jnp.float32) * jax.lax.rsqrt(var + BN_EPS)   # (F,)
    shift = beta.astype(jnp.float32) - mean * scale                   # (F,)
    w2_f = w2.astype(jnp.float32)
    w2s = w2_f * scale[None, :]                                       # (P, F)
    b2e = w2_f @ shift + b2.astype(jnp.float32)                       # (P,)

    # ---- Pass 2: apply conv1/ReLU/foldedBN/conv2/softmax/weighting -----------
    apply_cost = pl.CostEstimate(
        flops=int(N * (Fn * (2 * C + 1) + P * (2 * Fn + 6))),
        transcendentals=int(P * N),
        bytes_accessed=int(4 * (C * N + P * N)))
    out = pl.pallas_call(
        _apply_kernel,
        out_shape=jax.ShapeDtypeStruct((B, P, L), jnp.float32),
        grid=grid,
        in_specs=[smem, smem, smem, smem, x_spec],
        out_specs=pl.BlockSpec((1, P, TILE_L), lambda b, l: (b, 0, l)),
        compiler_params=pltpu.CompilerParams(
            dimension_semantics=("parallel", "parallel")),
        cost_estimate=apply_cost,
    )(w1_eff, b1_f, w2s, b2e, x)

    return out.reshape(values.shape)


def reference_forward(distances, values, params):
    """Pure-JAX reference of the PyTorch forward (training-mode BN)."""
    w1, b1, gamma, beta, w2, b2 = params
    dist_flat = distances.reshape(distances.shape[:2] + (-1,))
    val_flat = distances.reshape(values.shape[:2] + (-1,))
    data = jnp.concatenate([val_flat, dist_flat], axis=1)        # (B, 2C, L)
    h = jnp.einsum('fc,bcl->bfl', w1, data) + b1[None, :, None]
    h = jnp.maximum(h, 0.0)
    mean = jnp.mean(h, axis=(0, 2), keepdims=True)
    var = jnp.mean((h - mean) ** 2, axis=(0, 2), keepdims=True)
    h = (h - mean) / jnp.sqrt(var + BN_EPS)
    h = h * gamma[None, :, None] + beta[None, :, None]
    logits = jnp.einsum('pf,bfl->bpl', w2, h) + b2[None, :, None]
    w = jax.nn.softmax(logits, axis=1)
    return (val_flat * w).reshape(values.shape)


def init_params(key, n_points, n_features):
    """Deterministic synthetic parameters matching the nn.Sequential shapes."""
    k1, k2, k3, k4 = jax.random.split(key, 4)
    c_in = n_points * (n_features + 1)
    w1 = jax.random.normal(k1, (n_features, c_in), jnp.float32) * 0.2
    b1 = jax.random.normal(k2, (n_features,), jnp.float32) * 0.1
    gamma = jnp.ones((n_features,), jnp.float32)   # BatchNorm1d weight init
    beta = jnp.zeros((n_features,), jnp.float32)   # BatchNorm1d bias init
    w2 = jax.random.normal(k3, (n_points, n_features), jnp.float32) * 0.2
    b2 = jax.random.normal(k4, (n_points,), jnp.float32) * 0.1
    return (w1, b1, gamma, beta, w2, b2)


if __name__ == "__main__":
    n_points, n_features = 4, 1          # required for a consistent forward
    B, H, W = 2, 16, 16

    key = jax.random.PRNGKey(0)
    k_d, k_v, k_p = jax.random.split(key, 3)
    distances = jax.random.uniform(k_d, (B, n_points, H, W), jnp.float32)
    values = jax.random.normal(k_v, (B, n_points, H, W), jnp.float32)
    params = init_params(k_p, n_points, n_features)

    out = jax.block_until_ready(interpolation_forward(distances, values, params))
    ref = jax.block_until_ready(reference_forward(distances, values, params))

    if out.shape != values.shape:
        raise AssertionError(f"bad output shape {out.shape}")
    if not np.allclose(np.asarray(out), np.asarray(ref), atol=1e-5, rtol=1e-5):
        raise AssertionError("Pallas kernel does not match reference")

    print("KERNEL_OK")
</pallas_src>

<mosaic_0001>
module attributes {stable_mosaic.version = 11 : i64} {
  func.func @_stats_kernel(%arg0: i32, %arg1: i32, %arg2: memref<1x4xf32, #tpu.memory_space<smem>>, %arg3: memref<1xf32, #tpu.memory_space<smem>>, %arg4: memref<1x4x256xf32, #tpu.memory_space<vmem>>, %arg5: memref<2x256xf32, #tpu.memory_space<vmem>>) attributes {dimension_semantics = [#tpu.dimension_semantics<arbitrary>, #tpu.dimension_semantics<arbitrary>], iteration_bounds = array<i64: 2, 1>, scalar_prefetch = 0 : i64, scratch_operands = 0 : i64, tpu.core_type = #tpu.core_type<tc>, window_params = [{transform_indices = @transform_0, window_bounds = array<i64: 1, 4>}, {transform_indices = @transform_1, window_bounds = array<i64: 1>}, {transform_indices = @transform_2, window_bounds = array<i64: 1, 4, 256>}, {pipeline_mode = #tpu.pipeline_mode<synchronous>, transform_indices = @transform_3, window_bounds = array<i64: 2, 256>}]} {
    %c0_i32 = arith.constant 0 : i32
    %0 = arith.cmpi eq, %arg0, %c0_i32 : i32
    %c0_i32_0 = arith.constant 0 : i32
    %1 = arith.cmpi eq, %arg1, %c0_i32_0 : i32
    %2 = arith.andi %0, %1 : i1
    %3 = arith.extui %2 : i1 to i32
    %c0_i32_1 = arith.constant 0 : i32
    %4 = arith.cmpi ne, %3, %c0_i32_1 : i32
    scf.if %4 {
      %cst_14 = arith.constant 0.000000e+00 : f32
      %36 = vector.broadcast %cst_14 : f32 to vector<2x256xf32>
      %c0_15 = arith.constant 0 : index
      %c0_16 = arith.constant 0 : index
      %37 = vector.load %arg5[%c0_15, %c0_16] : memref<2x256xf32, #tpu.memory_space<vmem>>, vector<2x256xf32>
      tpu.vector_store %arg5[%c0_15, %c0_16], %36 {strides = array<i32>} : memref<2x256xf32, #tpu.memory_space<vmem>>, vector<2x256xf32>,
    } else {
    }
    %c0 = arith.constant 0 : index
    %c0_2 = arith.constant 0 : index
    %c0_3 = arith.constant 0 : index
    %5 = vector.load %arg4[%c0, %c0_2, %c0_3] : memref<1x4x256xf32, #tpu.memory_space<vmem>>, vector<1x4x256xf32>
    %6 = vector.shape_cast %5 : vector<1x4x256xf32> to vector<4x256xf32>
    %c0_4 = arith.constant 0 : index
    %c0_5 = arith.constant 0 : index
    %7 = memref.load %arg2[%c0_4, %c0_5] : memref<1x4xf32, #tpu.memory_space<smem>>
    %8 = vector.extract_strided_slice %6 {offsets = [0, 0], sizes = [1, 256], strides = [1, 1]} : vector<4x256xf32> to vector<1x256xf32>
    %9 = vector.broadcast %7 : f32 to vector<1x256xf32>
    %10 = arith.mulf %9, %8 : vector<1x256xf32>
    %c0_6 = arith.constant 0 : index
    %11 = memref.load %arg3[%c0_6] : memref<1xf32, #tpu.memory_space<smem>>
    %12 = vector.broadcast %11 : f32 to vector<1x256xf32>
    %13 = arith.addf %10, %12 : vector<1x256xf32>
    %c0_7 = arith.constant 0 : index
    %c1 = arith.constant 1 : index
    %14 = memref.load %arg2[%c0_7, %c1] : memref<1x4xf32, #tpu.memory_space<smem>>
    %15 = vector.extract_strided_slice %6 {offsets = [1, 0], sizes = [1, 256], strides = [1, 1]} : vector<4x256xf32> to vector<1x256xf32>
    %16 = vector.broadcast %14 : f32 to vector<1x256xf32>
    %17 = arith.mulf %16, %15 : vector<1x256xf32>
    %18 = arith.addf %13, %17 : vector<1x256xf32>
    %c0_8 = arith.constant 0 : index
    %c2 = arith.constant 2 : index
    %19 = memref.load %arg2[%c0_8, %c2] : memref<1x4xf32, #tpu.memory_space<smem>>
    %20 = vector.extract_strided_slice %6 {offsets = [2, 0], sizes = [1, 256], strides = [1, 1]} : vector<4x256xf32> to vector<1x256xf32>
    %21 = vector.broadcast %19 : f32 to vector<1x256xf32>
    %22 = arith.mulf %21, %20 : vector<1x256xf32>
    %23 = arith.addf %18, %22 : vector<1x256xf32>
    %c0_9 = arith.constant 0 : index
    %c3 = arith.constant 3 : index
    %24 = memref.load %arg2[%c0_9, %c3] : memref<1x4xf32, #tpu.memory_space<smem>>
    %25 = vector.extract_strided_slice %6 {offsets = [3, 0], sizes = [1, 256], strides = [1, 1]} : vector<4x256xf32> to vector<1x256xf32>
    %26 = vector.broadcast %24 : f32 to vector<1x256xf32>
    %27 = arith.mulf %26, %25 : vector<1x256xf32>
    %28 = arith.addf %23, %27 : vector<1x256xf32>
    %cst = arith.constant 0.000000e+00 : f32
    %29 = vector.broadcast %cst : f32 to vector<1x256xf32>
    %30 = arith.maximumf %28, %29 : vector<1x256xf32>
    %31 = arith.mulf %30, %30 : vector<1x256xf32>
    %32 = tpu.concatenate %30, %31 in 0 : vector<1x256xf32>, vector<1x256xf32> -> vector<2x256xf32>
    %c0_10 = arith.constant 0 : index
    %c0_11 = arith.constant 0 : index
    %33 = vector.load %arg5[%c0_10, %c0_11] : memref<2x256xf32, #tpu.memory_space<vmem>>, vector<2x256xf32>
    %34 = arith.addf %33, %32 : vector<2x256xf32>
    %c0_12 = arith.constant 0 : index
    %c0_13 = arith.constant 0 : index
    %35 = vector.load %arg5[%c0_12, %c0_13] : memref<2x256xf32, #tpu.memory_space<vmem>>, vector<2x256xf32>
    tpu.vector_store %arg5[%c0_12, %c0_13], %34 {strides = array<i32>} : memref<2x256xf32, #tpu.memory_space<vmem>>, vector<2x256xf32>,
    return
  }
  func.func @transform_0(%arg0: i32, %arg1: i32) -> (i32, i32) {
    %c0_i32 = arith.constant 0 : i32
    %c0_i32_0 = arith.constant 0 : i32
    %c0_i32_1 = arith.constant 0 : i32
    return %c0_i32, %c0_i32_0 : i32, i32
  }
  func.func @transform_1(%arg0: i32, %arg1: i32) -> i32 {
    %c0_i32 = arith.constant 0 : i32
    %c0_i32_0 = arith.constant 0 : i32
    return %c0_i32 : i32
  }
  func.func @transform_2(%arg0: i32, %arg1: i32) -> (i32, i32, i32) {
    %c0_i32 = arith.constant 0 : i32
    %c0_i32_0 = arith.constant 0 : i32
    return %arg0, %c0_i32, %arg1 : i32, i32, i32
  }
  func.func @transform_3(%arg0: i32, %arg1: i32) -> (i32, i32) {
    %c0_i32 = arith.constant 0 : i32
    %c0_i32_0 = arith.constant 0 : i32
    %c0_i32_1 = arith.constant 0 : i32
    return %c0_i32, %c0_i32_0 : i32, i32
  }
}

module attributes {stable_mosaic.version = 11 : i64} {
  func.func @_apply_kernel(%arg0: i32, %arg1: i32, %arg2: memref<1x4xf32, #tpu.memory_space<smem>>, %arg3: memref<1xf32, #tpu.memory_space<smem>>, %arg4: memref<4x1xf32, #tpu.memory_space<smem>>, %arg5: memref<4xf32, #tpu.memory_space<smem>>, %arg6: memref<1x4x256xf32, #tpu.memory_space<vmem>>, %arg7: memref<1x4x256xf32, #tpu.memory_space<vmem>>) attributes {dimension_semantics = [#tpu.dimension_semantics<parallel>, #tpu.dimension_semantics<parallel>], iteration_bounds = array<i64: 2, 1>, scalar_prefetch = 0 : i64, scratch_operands = 0 : i64, tpu.core_type = #tpu.core_type<tc>, window_params = [{transform_indices = @transform_0, window_bounds = array<i64: 1, 4>}, {transform_indices = @transform_1, window_bounds = array<i64: 1>}, {transform_indices = @transform_2, window_bounds = array<i64: 4, 1>}, {transform_indices = @transform_3, window_bounds = array<i64: 4>}, {transform_indices = @transform_4, window_bounds = array<i64: 1, 4, 256>}, {transform_indices = @transform_5, window_bounds = array<i64: 1, 4, 256>}]} {
    %c0 = arith.constant 0 : index
    %c0_0 = arith.constant 0 : index
    %c0_1 = arith.constant 0 : index
    %0 = vector.load %arg6[%c0, %c0_0, %c0_1] : memref<1x4x256xf32, #tpu.memory_space<vmem>>, vector<1x4x256xf32>
    %1 = vector.shape_cast %0 : vector<1x4x256xf32> to vector<4x256xf32>
    %c0_2 = arith.constant 0 : index
    %c0_3 = arith.constant 0 : index
    %2 = memref.load %arg2[%c0_2, %c0_3] : memref<1x4xf32, #tpu.memory_space<smem>>
    %3 = vector.extract_strided_slice %1 {offsets = [0, 0], sizes = [1, 256], strides = [1, 1]} : vector<4x256xf32> to vector<1x256xf32>
    %4 = vector.broadcast %2 : f32 to vector<1x256xf32>
    %5 = arith.mulf %4, %3 : vector<1x256xf32>
    %c0_4 = arith.constant 0 : index
    %6 = memref.load %arg3[%c0_4] : memref<1xf32, #tpu.memory_space<smem>>
    %7 = vector.broadcast %6 : f32 to vector<1x256xf32>
    %8 = arith.addf %5, %7 : vector<1x256xf32>
    %c0_5 = arith.constant 0 : index
    %c1 = arith.constant 1 : index
    %9 = memref.load %arg2[%c0_5, %c1] : memref<1x4xf32, #tpu.memory_space<smem>>
    %10 = vector.extract_strided_slice %1 {offsets = [1, 0], sizes = [1, 256], strides = [1, 1]} : vector<4x256xf32> to vector<1x256xf32>
    %11 = vector.broadcast %9 : f32 to vector<1x256xf32>
    %12 = arith.mulf %11, %10 : vector<1x256xf32>
    %13 = arith.addf %8, %12 : vector<1x256xf32>
    %c0_6 = arith.constant 0 : index
    %c2 = arith.constant 2 : index
    %14 = memref.load %arg2[%c0_6, %c2] : memref<1x4xf32, #tpu.memory_space<smem>>
    %15 = vector.extract_strided_slice %1 {offsets = [2, 0], sizes = [1, 256], strides = [1, 1]} : vector<4x256xf32> to vector<1x256xf32>
    %16 = vector.broadcast %14 : f32 to vector<1x256xf32>
    %17 = arith.mulf %16, %15 : vector<1x256xf32>
    %18 = arith.addf %13, %17 : vector<1x256xf32>
    %c0_7 = arith.constant 0 : index
    %c3 = arith.constant 3 : index
    %19 = memref.load %arg2[%c0_7, %c3] : memref<1x4xf32, #tpu.memory_space<smem>>
    %20 = vector.extract_strided_slice %1 {offsets = [3, 0], sizes = [1, 256], strides = [1, 1]} : vector<4x256xf32> to vector<1x256xf32>
    %21 = vector.broadcast %19 : f32 to vector<1x256xf32>
    %22 = arith.mulf %21, %20 : vector<1x256xf32>
    %23 = arith.addf %18, %22 : vector<1x256xf32>
    %cst = arith.constant 0.000000e+00 : f32
    %24 = vector.broadcast %cst : f32 to vector<1x256xf32>
    %25 = arith.maximumf %23, %24 : vector<1x256xf32>
    %c0_8 = arith.constant 0 : index
    %c0_9 = arith.constant 0 : index
    %26 = memref.load %arg4[%c0_8, %c0_9] : memref<4x1xf32, #tpu.memory_space<smem>>
    %27 = vector.broadcast %26 : f32 to vector<1x256xf32>
    %28 = arith.mulf %27, %25 : vector<1x256xf32>
    %c0_10 = arith.constant 0 : index
    %29 = memref.load %arg5[%c0_10] : memref<4xf32, #tpu.memory_space<smem>>
    %30 = vector.broadcast %29 : f32 to vector<1x256xf32>
    %31 = arith.addf %28, %30 : vector<1x256xf32>
    %c1_11 = arith.constant 1 : index
    %c0_12 = arith.constant 0 : index
    %32 = memref.load %arg4[%c1_11, %c0_12] : memref<4x1xf32, #tpu.memory_space<smem>>
    %33 = vector.broadcast %32 : f32 to vector<1x256xf32>
    %34 = arith.mulf %33, %25 : vector<1x256xf32>
    %c1_13 = arith.constant 1 : index
    %35 = memref.load %arg5[%c1_13] : memref<4xf32, #tpu.memory_space<smem>>
    %36 = vector.broadcast %35 : f32 to vector<1x256xf32>
    %37 = arith.addf %34, %36 : vector<1x256xf32>
    %c2_14 = arith.constant 2 : index
    %c0_15 = arith.constant 0 : index
    %38 = memref.load %arg4[%c2_14, %c0_15] : memref<4x1xf32, #tpu.memory_space<smem>>
    %39 = vector.broadcast %38 : f32 to vector<1x256xf32>
    %40 = arith.mulf %39, %25 : vector<1x256xf32>
    %c2_16 = arith.constant 2 : index
    %41 = memref.load %arg5[%c2_16] : memref<4xf32, #tpu.memory_space<smem>>
    %42 = vector.broadcast %41 : f32 to vector<1x256xf32>
    %43 = arith.addf %40, %42 : vector<1x256xf32>
    %c3_17 = arith.constant 3 : index
    %c0_18 = arith.constant 0 : index
    %44 = memref.load %arg4[%c3_17, %c0_18] : memref<4x1xf32, #tpu.memory_space<smem>>
    %45 = vector.broadcast %44 : f32 to vector<1x256xf32>
    %46 = arith.mulf %45, %25 : vector<1x256xf32>
    %c3_19 = arith.constant 3 : index
    %47 = memref.load %arg5[%c3_19] : memref<4xf32, #tpu.memory_space<smem>>
    %48 = vector.broadcast %47 : f32 to vector<1x256xf32>
    %49 = arith.addf %46, %48 : vector<1x256xf32>
    %50 = tpu.concatenate %31, %37, %43, %49 in 0 : vector<1x256xf32>, vector<1x256xf32>, vector<1x256xf32>, vector<1x256xf32> -> vector<4x256xf32>
    %cst_20 = arith.constant dense<0xFF800000> : vector<256xf32>
    %51 = vector.multi_reduction <maximumf>, %50, %cst_20 [0] : vector<4x256xf32> to vector<256xf32>
    %52 = vector.shape_cast %51 : vector<256xf32> to vector<1x256xf32>
    %53 = vector.broadcast %52 : vector<1x256xf32> to vector<4x256xf32>
    %54 = arith.subf %50, %53 : vector<4x256xf32>
    %55 = math.exp %54 : vector<4x256xf32>
    %cst_21 = arith.constant dense<0.000000e+00> : vector<256xf32>
    %56 = vector.multi_reduction <add>, %55, %cst_21 [0] : vector<4x256xf32> to vector<256xf32>
    %57 = vector.shape_cast %56 : vector<256xf32> to vector<1x256xf32>
    %58 = tpu.reciprocal %57 : vector<1x256xf32> -> vector<1x256xf32>
    %59 = vector.broadcast %58 : vector<1x256xf32> to vector<4x256xf32>
    %60 = arith.mulf %55, %59 : vector<4x256xf32>
    %61 = arith.mulf %1, %60 : vector<4x256xf32>
    %c0_22 = arith.constant 0 : index
    %c0_23 = arith.constant 0 : index
    %c0_24 = arith.constant 0 : index
    %62 = vector.load %arg7[%c0_22, %c0_23, %c0_24] : memref<1x4x256xf32, #tpu.memory_space<vmem>>, vector<1x4x256xf32>
    %63 = vector.shape_cast %62 : vector<1x4x256xf32> to vector<4x256xf32>
    %64 = vector.shape_cast %61 : vector<4x256xf32> to vector<1x4x256xf32>
    tpu.vector_store %arg7[%c0_22, %c0_23, %c0_24], %64 {strides = array<i32>} : memref<1x4x256xf32, #tpu.memory_space<vmem>>, vector<1x4x256xf32>,
    return
  }
  func.func @transform_0(%arg0: i32, %arg1: i32) -> (i32, i32) {
    %c0_i32 = arith.constant 0 : i32
    %c0_i32_0 = arith.constant 0 : i32
    %c0_i32_1 = arith.constant 0 : i32
    return %c0_i32, %c0_i32_0 : i32, i32
  }
  func.func @transform_1(%arg0: i32, %arg1: i32) -> i32 {
    %c0_i32 = arith.constant 0 : i32
    %c0_i32_0 = arith.constant 0 : i32
    return %c0_i32 : i32
  }
  func.func @transform_2(%arg0: i32, %arg1: i32) -> (i32, i32) {
    %c0_i32 = arith.constant 0 : i32
    %c0_i32_0 = arith.constant 0 : i32
    %c0_i32_1 = arith.constant 0 : i32
    return %c0_i32, %c0_i32_0 : i32, i32
  }
  func.func @transform_3(%arg0: i32, %arg1: i32) -> i32 {
    %c0_i32 = arith.constant 0 : i32
    %c0_i32_0 = arith.constant 0 : i32
    return %c0_i32 : i32
  }
  func.func @transform_4(%arg0: i32, %arg1: i32) -> (i32, i32, i32) {
    %c0_i32 = arith.constant 0 : i32
    %c0_i32_0 = arith.constant 0 : i32
    return %arg0, %c0_i32, %arg1 : i32, i32, i32
  }
  func.func @transform_5(%arg0: i32, %arg1: i32) -> (i32, i32, i32) {
    %c0_i32 = arith.constant 0 : i32
    %c0_i32_0 = arith.constant 0 : i32
    return %arg0, %c0_i32, %arg1 : i32, i32, i32
  }
}

</mosaic_0001>

<llo_original>
// kernel: interpolation_forward.2
$region0: #{interpolation_forward.2}
  #allocation0 [shape = 'u32[]', space=smem, size = 0x4, offset = 0x4, fixed_abs, tag = 'smem constant byte address 0x4 - core index']
  #allocation1 [shape = 'u32[144,128]{1,0:T(1,128)}', space=vmem, size = 0x12000, scoped, tag = 'internal scratch']
  #allocation2 [shape = 'f32[1]{0:T(128)S(6)}', space=smem, size = 0x200, scoped, tag = 'scoped memory for interpolation_forward.2']
  %s0 = inlined_call_operand.vmem [shape: f32[1,4], index: 0, kind: input, shape index: {}]
  %s1 = inlined_call_operand.<no memory space> [shape: f32[1], index: 1, kind: input, shape index: {}]
  %s2 = inlined_call_operand.vmem [shape: f32[2,4,256], index: 2, kind: input, shape index: {}]
  %s3 = inlined_call_operand.vmem [shape: f32[2,256], index: 3, kind: output, shape index: {}]
  %s4 = sld [smem:[#allocation0]]
  $region53: #{interpolation_forward.2} parent=0
    _
  %s6 = ssub.s32 1, %s4
  %s7 = scalar_select 0, %s6, %s4
  %8 = sst [smem:[#allocation2]] %s1
  $region1: #{interpolation_forward.2} parent=0
    #allocation3 [shape = 'u8[512]{0}', space=smem, size = 0x200, scoped, tag = 'input window, operand 0, single buffered']
    #allocation4 [shape = 's32[2]{0}', space=sflag, size = 0x8, scoped, tag = 'scoped memory for interpolation_forward.2']
    %9 = vsyncpa [#allocation4], 0
    loop: start=0, step=1, limit=4
    $region2: #{interpolation_forward.2} parent=1 // loop_pre_header
      _
    $region3: #{interpolation_forward.2} parent=1 // loop_header
      %s11 = sphi 0, %s15
      %p12 = scmp.ge.s32.totalorder %s11, 4
      %s18 = sphi 0, %s30
      %s19 = sphi 0, %s26
      %s20 = sphi 0, %s18
      %s21 = sphi 0, %s19
      %s22 = sphi 0, %s20
      %s23 = sphi 0, %s21
      %s31 = sphi 0, %s31
      %s33 = sphi 0, %s31
      %s34 = sphi 0, %s33
      %s48 = sphi 0, %s34
      %s52 = sphi 0, %s52
      %s54 = sphi 0, %s52
      %s55 = sphi 0, %s54
      %s69 = sphi 0, %s55
      %s77 = sphi 0, %s79
      %s80 = sphi 0, %s77
      %s81 = sphi 0, %s80
      %s97 = sphi 0, %s81
      %s101 = sphi 0, %s101
      %s103 = sphi 0, %s101
      %s104 = sphi 0, %s103
      %s118 = sphi 0, %s104
    $region4: #{interpolation_forward.2} parent=1 // loop_header_branch
      %14 = sbr.rel (%p12) target = $region8
    $region5: #{interpolation_forward.2} parent=1 // loop_body
      %s16 = ssub.s32 %s11, 1
      %s17 = ssub.s32 %s11, 2
      %s24 = sadd.s32 1, %s19
      %p25 = scmp.ge.s32.totalorder %s24, 1
      %s26 = scalar_select %p25, 0, %s24
      %s27 = sadd.s32 1, %s18
      %s28 = scalar_select %p25, %s27, %s18
      %p29 = scmp.ge.s32.totalorder %s28, 2
      %s30 = scalar_select %p29, 0, %s28
      %s32 = sadd.s32 %s31, 1
      %p35 = scmp.eq.s32.totalorder %s11, 1
      %p36 = scmp.ne.s32.totalorder %s31, %s33
      %p37 = scmp.eq.s32.totalorder %s11, 0
      %p38 = por %p36, %p37
      %p39 = scmp.ne.s32.totalorder %s31, %s33
      %p40 = scmp.eq.s32.totalorder %s16, 1
      %p41 = por %p39, %p40
      %p42 = scmp.ne.s32.totalorder %s33, %s34
      %p43 = scmp.eq.s32.totalorder %s16, 0
      %p44 = por %p42, %p43
      %p45 = scmp.ne.s32.totalorder %s33, %s34
      %p46 = scmp.eq.s32.totalorder %s17, 1
      %p47 = por %p45, %p46
      %p49 = scmp.ne.s32.totalorder %s34, %s48
      %p50 = scmp.eq.s32.totalorder %s17, 0
      %p51 = por %p49, %p50
      %s53 = sadd.s32 %s52, 1
      %p56 = scmp.eq.s32.totalorder %s11, 1
      %p57 = scmp.ne.s32.totalorder %s52, %s54
      %p58 = scmp.eq.s32.totalorder %s11, 0
      %p59 = por %p57, %p58
      %p60 = scmp.ne.s32.totalorder %s52, %s54
      %p61 = scmp.eq.s32.totalorder %s16, 1
      %p62 = por %p60, %p61
      %p63 = scmp.ne.s32.totalorder %s54, %s55
      %p64 = scmp.eq.s32.totalorder %s16, 0
      %p65 = por %p63, %p64
      %p66 = scmp.ne.s32.totalorder %s54, %s55
      %p67 = scmp.eq.s32.totalorder %s17, 1
      %p68 = por %p66, %p67
      %p70 = scmp.ne.s32.totalorder %s55, %s69
      %p71 = scmp.eq.s32.totalorder %s17, 0
      %p72 = por %p70, %p71
      %s73 = ssub.s32 %s18, %s30
      %s74 = ssub.s32 %s19, %s26
      %s75 = sor.u32 %s73, %s74
      %p76 = scmp.eq.s32.totalorder %s75, 0
      %s78 = sadd.s32 %s77, 1
      %s79 = scalar_select %p76, %s77, %s78
      %p82 = pneg %p76
      %p83 = scmp.eq.s32.totalorder %s11, 1
      %p84 = por %p82, %p83
      %p85 = scmp.ne.s32.totalorder %s77, %s80
      %p86 = scmp.eq.s32.totalorder %s11, 0
      %p87 = por %p85, %p86
      %p88 = scmp.ne.s32.totalorder %s77, %s80
      %p89 = scmp.eq.s32.totalorder %s16, 1
      %p90 = por %p88, %p89
      %p91 = scmp.ne.s32.totalorder %s80, %s81
      %p92 = scmp.eq.s32.totalorder %s16, 0
      %p93 = por %p91, %p92
      %p94 = scmp.ne.s32.totalorder %s80, %s81
      %p95 = scmp.eq.s32.totalorder %s17, 1
      %p96 = por %p94, %p95
      %p98 = scmp.ne.s32.totalorder %s81, %s97
      %p99 = scmp.eq.s32.totalorder %s17, 0
      %p100 = por %p98, %p99
      %s102 = sadd.s32 %s101, 1
      %p105 = scmp.eq.s32.totalorder %s11, 1
      %p106 = scmp.ne.s32.totalorder %s101, %s103
      %p107 = scmp.eq.s32.totalorder %s11, 0
      %p108 = por %p106, %p107
      %p109 = scmp.ne.s32.totalorder %s101, %s103
      %p110 = scmp.eq.s32.totalorder %s16, 1
      %p111 = por %p109, %p110
      %p112 = scmp.ne.s32.totalorder %s103, %s104
      %p113 = scmp.eq.s32.totalorder %s16, 0
      %p114 = por %p112, %p113
      %p115 = scmp.ne.s32.totalorder %s103, %s104
      %p116 = scmp.eq.s32.totalorder %s17, 1
      %p117 = por %p115, %p116
      %p119 = scmp.ne.s32.totalorder %s104, %s118
      %p120 = scmp.eq.s32.totalorder %s17, 0
      %p121 = por %p119, %p120
      %p122 = scmp.le.s32.totalorder 1, %s11
      %p123 = scmp.lt.s32.totalorder %s11, 3
      %p124 = pnand %p122, %p123
      %p125 = pneg %p124
      // Predicated region
      $region9: #{interpolation_forward.2} parent=5 // pred_check
        _
      $region10: #{interpolation_forward.2} parent=5 // pred_check_branch
        %127 = sbr.rel (%p124) target = $region12
      $region11: #{interpolation_forward.2} parent=5 // pred_region
        %s128 = ssub.s32 %s11, 1
        // Predicated region
        $region13: #{interpolation_forward.2} parent=11 // pred_check
          %p129 = pneg %p44
        $region14: #{interpolation_forward.2} parent=11 // pred_check_branch
          %131 = sbr.rel (%p129) target = $region16
        $region15: #{interpolation_forward.2} parent=11 // pred_region
          %s133 = ssub.s32 16, 16
          %134 = vsyncadd [#allocation4], %s133
          %s136 = sshll.u32 %s0, 4
          %s137 = int_to_ptr.vmem [resolvable:$true] %s136
          %139 = dma.vmem_to_smem %s137, 16, [#allocation3], [#allocation4]
        $region16: #{interpolation_forward.2} parent=11 // pred_fallthru
          _
        // Predicated region
        $region17: #{interpolation_forward.2} parent=11 // pred_check
          %p140 = pneg %p65
        $region18: #{interpolation_forward.2} parent=11 // pred_check_branch
          %142 = sbr.rel (%p140) target = $region20
        $region19: #{interpolation_forward.2} parent=11 // pred_region
          _
        $region20: #{interpolation_forward.2} parent=11 // pred_fallthru
          _
      $region12: #{interpolation_forward.2} parent=5 // pred_fallthru
        _
      %p143 = scmp.lt.s32.totalorder %s11, 2
      // Predicated region
      $region21: #{interpolation_forward.2} parent=5 // pred_check
        %p144 = pneg %p143
      $region22: #{interpolation_forward.2} parent=5 // pred_check_branch
        %146 = sbr.rel (%p144) target = $region24
      $region23: #{interpolation_forward.2} parent=5 // pred_region
        // Predicated region
        $region25: #{interpolation_forward.2} parent=23 // pred_check
          %p147 = pneg %p87
        $region26: #{interpolation_forward.2} parent=23 // pred_check_branch
          %149 = sbr.rel (%p147) target = $region28
        $region27: #{interpolation_forward.2} parent=23 // pred_region
          %s150 = smul.u32 2, %s19
          %p151 = scmp.lt.s32.totalorder %s18, 1
          %s152 = scalar_select %p151, %s18, 1
          %p153 = scmp.lt.s32.totalorder %s150, 1
          %s154 = scalar_select %p153, %s150, 1
          %s155 = smul.addr %s152, 2
          %s156 = sadd.s32 %s154, %s155
          %s157 = smul.addr %s156, 4
          %s158 = scalar_lea.vmem %s2, %s157
          %s159 = smul.u32 2, %s19
        $region28: #{interpolation_forward.2} parent=23 // pred_fallthru
          _
      $region24: #{interpolation_forward.2} parent=5 // pred_fallthru
        _
      %p160 = scmp.le.s32.totalorder 1, %s11
      %p161 = scmp.lt.s32.totalorder %s11, 3
      %p162 = pnand %p160, %p161
      %p163 = pneg %p162
      // Predicated region
      $region29: #{interpolation_forward.2} parent=5 // pred_check
        _
      $region30: #{interpolation_forward.2} parent=5 // pred_check_branch
        %165 = sbr.rel (%p162) target = $region32
      $region31: #{interpolation_forward.2} parent=5 // pred_region
        %s166 = ssub.s32 %s11, 1
        // Predicated region
        $region33: #{interpolation_forward.2} parent=31 // pred_check
          %p167 = pneg %p44
        $region34: #{interpolation_forward.2} parent=31 // pred_check_branch
          %169 = sbr.rel (%p167) target = $region36
        $region35: #{interpolation_forward.2} parent=31 // pred_region
          %170 = dma.done [#allocation4], 16
        $region36: #{interpolation_forward.2} parent=31 // pred_fallthru
          _
        %171 = sfence
        %p172 = pneg %p44
        %p173 = pneg %p41
        %p174 = pneg %p65
        %p175 = pneg %p62
        %s176 = smul.u32 2, %s21
        %p177 = scmp.lt.s32.totalorder %s20, 1
        %s178 = scalar_select %p177, %s20, 1
        %p179 = scmp.lt.s32.totalorder %s176, 1
        %s180 = scalar_select %p179, %s176, 1
        %s181 = smul.addr %s178, 2
        %s182 = sadd.s32 %s180, %s181
        %s183 = smul.addr %s182, 4
        %s184 = scalar_lea.vmem %s2, %s183
        %p185 = pneg %p93
        %p186 = pneg %p90
        %p187 = pneg %p114
        %p188 = pneg %p111
        %s189 = smul.u32 2, %s21
        %p190 = scmp.lt.s32.totalorder %s20, 1
        %s191 = scalar_select %p190, %s20, 1
        %p192 = scmp.lt.s32.totalorder %s189, 1
        %s193 = scalar_select %p192, %s189, 1
        %s194 = smul.addr %s191, 2
        %s195 = sadd.s32 %s193, %s194
        %s196 = smul.addr %s195, 4
        %s197 = scalar_lea.vmem %s2, %s196
        %s198 = smul.u32 2, %s21
        %p199 = scmp.eq.s32.totalorder %s20, 0
        %p200 = scmp.eq.s32.totalorder %s21, 0
        %p201 = pnand %p199, %p200
        %p202 = pneg %p201
        // Predicated region
        $region37: #{interpolation_forward.2} parent=31 // pred_check
          _
        $region38: #{interpolation_forward.2} parent=31 // pred_check_branch
          %204 = sbr.rel (%p201) target = $region40
        $region39: #{interpolation_forward.2} parent=31 // pred_region
          %205 = vst [vmem:[%s3] sm:$0xf] 0.0
        $region40: #{interpolation_forward.2} parent=31 // pred_fallthru
          _
        %v206 = vld [vmem:[%s197] sm:$0xff]
        %s207 = sld [smem:[#allocation3]]
        %v208 = vstv %s207
        %v209 = vmul.f32 %v208, %v206
        %s210 = sld [smem:[#allocation2]]
        %v211 = vstv %s210
        %v212 = vadd.f32 %v209, %v211
        %s213 = sld [smem:[#allocation3 + $0x1]]
        %v214 = vstv %s213
        %v215 = vmul.f32 %v214, %v206
        %v217 = vrot.slane %v215, 5
        %v218 = vrot.slane %v217, 4
        %v220 = vadd.f32 %v212, %v218
        %s221 = sld [smem:[#allocation3 + $0x2]]
        %v222 = vstv %s221
        %v223 = vmul.f32 %v222, %v206
        %v225 = vrot.slane %v223, 6
        %v226 = vrot.slane %v225, 4
        %v228 = vadd.f32 %v220, %v226
        %s229 = sld [smem:[#allocation3 + $0x3]]
        %v230 = vstv %s229
        %v231 = vmul.f32 %v230, %v206
        %v233 = vrot.slane %v231, 7
        %v234 = vrot.slane %v233, 4
        %v236 = vadd.f32 %v228, %v234
        %v237 = vmax.f32 %v236, 0.0
        %v238 = vmul.f32 %v237, %v237
        %v240 = vlaneseq
        %v241 = vshrl.u32 %v240, 7
        %v242 = vsub.s32 0, %v241
        %v243 = vrot.slane %v237, %v242
        %v244 = vlaneseq
        %v245 = vshrl.u32 %v244, 7
        %v246 = vsub.s32 4, %v245
        %v247 = vrot.slane %v237, %v246
        %v251 = vlaneseq
        %v252 = vshrl.u32 %v251, 7
        %v253 = vsub.s32 0, %v252
        %v254 = vrot.slane %v238, %v253
        %v255 = vlaneseq
        %v256 = vshrl.u32 %v255, 7
        %v257 = vsub.s32 4, %v256
        %v258 = vrot.slane %v238, %v257
        %vm261 = vcmask 1040384
        %v262 = vsel %vm261, %v243, %v254
        %v263 = vsel %vm261, %v247, %v258
        %v264 = vld [vmem:[%s3] sm:$0xf]
        %v267 = vcombine.low %v262, %v263
        %v269 = vunpack.c.l.s4 1983009808
        %v270 = vunpack.c.0.s8 %v269
        %v271 = vlaneseq
        %v272 = vshrl.u32 %v271, 7
        %v273 = vsub.s32 %v270, %v272
        %v274 = vrot.slane %v267, %v273
        %v276 = vadd.f32 %v264, %v274
        %277 = vst [vmem:[%s3] sm:$0xf] %v276
        // Predicated region
        $region41: #{interpolation_forward.2} parent=31 // pred_check
          %p278 = pneg %p111
        $region42: #{interpolation_forward.2} parent=31 // pred_check_branch
          %280 = sbr.rel (%p278) target = $region44
        $region43: #{interpolation_forward.2} parent=31 // pred_region
          _
        $region44: #{interpolation_forward.2} parent=31 // pred_fallthru
          _
        // Predicated region
        $region45: #{interpolation_forward.2} parent=31 // pred_check
          %p281 = pneg %p111
        $region46: #{interpolation_forward.2} parent=31 // pred_check_branch
          %283 = sbr.rel (%p281) target = $region48
        $region47: #{interpolation_forward.2} parent=31 // pred_region
          _
        $region48: #{interpolation_forward.2} parent=31 // pred_fallthru
          _
      $region32: #{interpolation_forward.2} parent=5 // pred_fallthru
        _
      %p284 = scmp.le.s32.totalorder 2, %s11
      // Predicated region
      $region49: #{interpolation_forward.2} parent=5 // pred_check
        %p285 = pneg %p284
      $region50: #{interpolation_forward.2} parent=5 // pred_check_branch
        %287 = sbr.rel (%p285) target = $region52
      $region51: #{interpolation_forward.2} parent=5 // pred_region
        %s288 = ssub.s32 %s11, 2
      $region52: #{interpolation_forward.2} parent=5 // pred_fallthru
        _
    $region6: #{interpolation_forward.2} parent=1 // loop_footer
      %s15 = sadd.s32 1, %s11
    $region7: #{interpolation_forward.2} parent=1 // loop_footer_branch
      %10 = sbr.rel target = $region3
    $region8: #{interpolation_forward.2} parent=1 // loop_exit
      _
    %289 = vsyncpa [#allocation4], 1
    %s290 = scalar_lea.sflag [#allocation4], 1
    %291 = vsyncpa %s290, 1

// kernel: interpolation_forward.3
$region0: #{interpolation_forward.3}
  #allocation0 [shape = 'u32[]', space=smem, size = 0x4, offset = 0x4, fixed_abs, tag = 'smem constant byte address 0x4 - core index']
  #allocation1 [shape = 'u32[144,128]{1,0:T(1,128)}', space=vmem, size = 0x12000, scoped, tag = 'internal scratch']
  #allocation2 [shape = 'f32[1]{0:T(128)S(6)}', space=smem, size = 0x200, scoped, tag = 'scoped memory for interpolation_forward.3']
  %s0 = inlined_call_operand.vmem [shape: f32[1,4], index: 0, kind: input, shape index: {}]
  %s1 = inlined_call_operand.<no memory space> [shape: f32[1], index: 1, kind: input, shape index: {}]
  %s2 = inlined_call_operand.vmem [shape: f32[4,1], index: 2, kind: input, shape index: {}]
  %s3 = inlined_call_operand.vmem [shape: f32[4], index: 3, kind: input, shape index: {}]
  %s4 = inlined_call_operand.vmem [shape: f32[2,4,256], index: 4, kind: input, shape index: {}]
  %s5 = inlined_call_operand.vmem [shape: f32[2,4,256], index: 5, kind: output, shape index: {}]
  %s6 = sld [smem:[#allocation0]]
  $region65: #{interpolation_forward.3} parent=0
    _
  %s8 = ssub.s32 1, %s6
  %s9 = scalar_select 0, %s8, %s6
  %10 = sst [smem:[#allocation2]] %s1
  $region1: #{interpolation_forward.3} parent=0
    #allocation3 [shape = 'u8[512]{0}', space=smem, size = 0x200, scoped, tag = 'input window, operand 0, single buffered']
    #allocation4 [shape = 's32[2]{0}', space=sflag, size = 0x8, scoped, tag = 'scoped memory for interpolation_forward.3']
    #allocation5 [shape = 'u8[2048]{0}', space=smem, size = 0x800, scoped, tag = 'input window, operand 2, single buffered']
    #allocation6 [shape = 's32[1]{0}', space=sflag, size = 0x4, scoped, tag = 'scoped memory for interpolation_forward.3']
    #allocation7 [shape = 'u8[512]{0}', space=smem, size = 0x200, scoped, tag = 'input window, operand 3, single buffered']
    %11 = vsyncpa [#allocation4], 0
    %12 = vsyncpa [#allocation6], 0
    loop: start=0, step=1, limit=4
    $region2: #{interpolation_forward.3} parent=1 // loop_pre_header
      _
    $region3: #{interpolation_forward.3} parent=1 // loop_header
      %s14 = sphi 0, %s18
      %p15 = scmp.ge.s32.totalorder %s14, 4
      %s21 = sphi 0, %s33
      %s22 = sphi 0, %s29
      %s23 = sphi 0, %s21
      %s24 = sphi 0, %s22
      %s25 = sphi 0, %s23
      %s26 = sphi 0, %s24
      %s34 = sphi 0, %s34
      %s36 = sphi 0, %s34
      %s37 = sphi 0, %s36
      %s51 = sphi 0, %s37
      %s55 = sphi 0, %s55
      %s57 = sphi 0, %s55
      %s58 = sphi 0, %s57
      %s72 = sphi 0, %s58
      %s76 = sphi 0, %s76
      %s78 = sphi 0, %s76
      %s79 = sphi 0, %s78
      %s93 = sphi 0, %s79
      %s97 = sphi 0, %s97
      %s99 = sphi 0, %s97
      %s100 = sphi 0, %s99
      %s114 = sphi 0, %s100
      %s122 = sphi 0, %s124
      %s125 = sphi 0, %s122
      %s126 = sphi 0, %s125
      %s142 = sphi 0, %s126
      %s150 = sphi 0, %s152
      %s153 = sphi 0, %s150
      %s154 = sphi 0, %s153
      %s170 = sphi 0, %s154
    $region4: #{interpolation_forward.3} parent=1 // loop_header_branch
      %17 = sbr.rel (%p15) target = $region8
    $region5: #{interpolation_forward.3} parent=1 // loop_body
      %s19 = ssub.s32 %s14, 1
      %s20 = ssub.s32 %s14, 2
      %s27 = sadd.s32 1, %s22
      %p28 = scmp.ge.s32.totalorder %s27, 1
      %s29 = scalar_select %p28, 0, %s27
      %s30 = sadd.s32 1, %s21
      %s31 = scalar_select %p28, %s30, %s21
      %p32 = scmp.ge.s32.totalorder %s31, 2
      %s33 = scalar_select %p32, 0, %s31
      %s35 = sadd.s32 %s34, 1
      %p38 = scmp.eq.s32.totalorder %s14, 1
      %p39 = scmp.ne.s32.totalorder %s34, %s36
      %p40 = scmp.eq.s32.totalorder %s14, 0
      %p41 = por %p39, %p40
      %p42 = scmp.ne.s32.totalorder %s34, %s36
      %p43 = scmp.eq.s32.totalorder %s19, 1
      %p44 = por %p42, %p43
      %p45 = scmp.ne.s32.totalorder %s36, %s37
      %p46 = scmp.eq.s32.totalorder %s19, 0
      %p47 = por %p45, %p46
      %p48 = scmp.ne.s32.totalorder %s36, %s37
      %p49 = scmp.eq.s32.totalorder %s20, 1
      %p50 = por %p48, %p49
      %p52 = scmp.ne.s32.totalorder %s37, %s51
      %p53 = scmp.eq.s32.totalorder %s20, 0
      %p54 = por %p52, %p53
      %s56 = sadd.s32 %s55, 1
      %p59 = scmp.eq.s32.totalorder %s14, 1
      %p60 = scmp.ne.s32.totalorder %s55, %s57
      %p61 = scmp.eq.s32.totalorder %s14, 0
      %p62 = por %p60, %p61
      %p63 = scmp.ne.s32.totalorder %s55, %s57
      %p64 = scmp.eq.s32.totalorder %s19, 1
      %p65 = por %p63, %p64
      %p66 = scmp.ne.s32.totalorder %s57, %s58
      %p67 = scmp.eq.s32.totalorder %s19, 0
      %p68 = por %p66, %p67
      %p69 = scmp.ne.s32.totalorder %s57, %s58
      %p70 = scmp.eq.s32.totalorder %s20, 1
      %p71 = por %p69, %p70
      %p73 = scmp.ne.s32.totalorder %s58, %s72
      %p74 = scmp.eq.s32.totalorder %s20, 0
      %p75 = por %p73, %p74
      %s77 = sadd.s32 %s76, 1
      %p80 = scmp.eq.s32.totalorder %s14, 1
      %p81 = scmp.ne.s32.totalorder %s76, %s78
      %p82 = scmp.eq.s32.totalorder %s14, 0
      %p83 = por %p81, %p82
      %p84 = scmp.ne.s32.totalorder %s76, %s78
      %p85 = scmp.eq.s32.totalorder %s19, 1
      %p86 = por %p84, %p85
      %p87 = scmp.ne.s32.totalorder %s78, %s79
      %p88 = scmp.eq.s32.totalorder %s19, 0
      %p89 = por %p87, %p88
      %p90 = scmp.ne.s32.totalorder %s78, %s79
      %p91 = scmp.eq.s32.totalorder %s20, 1
      %p92 = por %p90, %p91
      %p94 = scmp.ne.s32.totalorder %s79, %s93
      %p95 = scmp.eq.s32.totalorder %s20, 0
      %p96 = por %p94, %p95
      %s98 = sadd.s32 %s97, 1
      %p101 = scmp.eq.s32.totalorder %s14, 1
      %p102 = scmp.ne.s32.totalorder %s97, %s99
      %p103 = scmp.eq.s32.totalorder %s14, 0
      %p104 = por %p102, %p103
      %p105 = scmp.ne.s32.totalorder %s97, %s99
      %p106 = scmp.eq.s32.totalorder %s19, 1
      %p107 = por %p105, %p106
      %p108 = scmp.ne.s32.totalorder %s99, %s100
      %p109 = scmp.eq.s32.totalorder %s19, 0
      %p110 = por %p108, %p109
      %p111 = scmp.ne.s32.totalorder %s99, %s100
      %p112 = scmp.eq.s32.totalorder %s20, 1
      %p113 = por %p111, %p112
      %p115 = scmp.ne.s32.totalorder %s100, %s114
      %p116 = scmp.eq.s32.totalorder %s20, 0
      %p117 = por %p115, %p116
      %s118 = ssub.s32 %s21, %s33
      %s119 = ssub.s32 %s22, %s29
      %s120 = sor.u32 %s118, %s119
      %p121 = scmp.eq.s32.totalorder %s120, 0
      %s123 = sadd.s32 %s122, 1
      %s124 = scalar_select %p121, %s122, %s123
      %p127 = pneg %p121
      %p128 = scmp.eq.s32.totalorder %s14, 1
      %p129 = por %p127, %p128
      %p130 = scmp.ne.s32.totalorder %s122, %s125
      %p131 = scmp.eq.s32.totalorder %s14, 0
      %p132 = por %p130, %p131
      %p133 = scmp.ne.s32.totalorder %s122, %s125
      %p134 = scmp.eq.s32.totalorder %s19, 1
      %p135 = por %p133, %p134
      %p136 = scmp.ne.s32.totalorder %s125, %s126
      %p137 = scmp.eq.s32.totalorder %s19, 0
      %p138 = por %p136, %p137
      %p139 = scmp.ne.s32.totalorder %s125, %s126
      %p140 = scmp.eq.s32.totalorder %s20, 1
      %p141 = por %p139, %p140
      %p143 = scmp.ne.s32.totalorder %s126, %s142
      %p144 = scmp.eq.s32.totalorder %s20, 0
      %p145 = por %p143, %p144
      %s146 = ssub.s32 %s21, %s33
      %s147 = ssub.s32 %s22, %s29
      %s148 = sor.u32 %s146, %s147
      %p149 = scmp.eq.s32.totalorder %s148, 0
      %s151 = sadd.s32 %s150, 1
      %s152 = scalar_select %p149, %s150, %s151
      %p155 = pneg %p149
      %p156 = scmp.eq.s32.totalorder %s14, 1
      %p157 = por %p155, %p156
      %p158 = scmp.ne.s32.totalorder %s150, %s153
      %p159 = scmp.eq.s32.totalorder %s14, 0
      %p160 = por %p158, %p159
      %p161 = scmp.ne.s32.totalorder %s150, %s153
      %p162 = scmp.eq.s32.totalorder %s19, 1
      %p163 = por %p161, %p162
      %p164 = scmp.ne.s32.totalorder %s153, %s154
      %p165 = scmp.eq.s32.totalorder %s19, 0
      %p166 = por %p164, %p165
      %p167 = scmp.ne.s32.totalorder %s153, %s154
      %p168 = scmp.eq.s32.totalorder %s20, 1
      %p169 = por %p167, %p168
      %p171 = scmp.ne.s32.totalorder %s154, %s170
      %p172 = scmp.eq.s32.totalorder %s20, 0
      %p173 = por %p171, %p172
      %p174 = scmp.le.s32.totalorder 1, %s14
      %p175 = scmp.lt.s32.totalorder %s14, 3
      %p176 = pnand %p174, %p175
      %p177 = pneg %p176
      // Predicated region
      $region9: #{interpolation_forward.3} parent=5 // pred_check
        _
      $region10: #{interpolation_forward.3} parent=5 // pred_check_branch
        %179 = sbr.rel (%p176) target = $region12
      $region11: #{interpolation_forward.3} parent=5 // pred_region
        %s180 = ssub.s32 %s14, 1
        // Predicated region
        $region13: #{interpolation_forward.3} parent=11 // pred_check
          %p181 = pneg %p47
        $region14: #{interpolation_forward.3} parent=11 // pred_check_branch
          %183 = sbr.rel (%p181) target = $region16
        $region15: #{interpolation_forward.3} parent=11 // pred_region
          %s185 = ssub.s32 16, 16
          %186 = vsyncadd [#allocation4], %s185
          %s188 = sshll.u32 %s0, 4
          %s189 = int_to_ptr.vmem [resolvable:$true] %s188
          %191 = dma.vmem_to_smem %s189, 16, [#allocation3], [#allocation4]
        $region16: #{interpolation_forward.3} parent=11 // pred_fallthru
          _
        // Predicated region
        $region17: #{interpolation_forward.3} parent=11 // pred_check
          %p192 = pneg %p68
        $region18: #{interpolation_forward.3} parent=11 // pred_check_branch
          %194 = sbr.rel (%p192) target = $region20
        $region19: #{interpolation_forward.3} parent=11 // pred_region
          _
        $region20: #{interpolation_forward.3} parent=11 // pred_fallthru
          _
        // Predicated region
        $region21: #{interpolation_forward.3} parent=11 // pred_check
          %p195 = pneg %p89
        $region22: #{interpolation_forward.3} parent=11 // pred_check_branch
          %197 = sbr.rel (%p195) target = $region24
        $region23: #{interpolation_forward.3} parent=11 // pred_region
          %s199 = ssub.s32 64, 64
          %200 = vsyncadd [#allocation6], %s199
          %s202 = sshll.u32 %s2, 4
          %s203 = int_to_ptr.vmem [resolvable:$true] %s202
          %205 = dma.vmem_to_smem %s203, 64, [#allocation5], [#allocation6]
        $region24: #{interpolation_forward.3} parent=11 // pred_fallthru
          _
        // Predicated region
        $region25: #{interpolation_forward.3} parent=11 // pred_check
          %p206 = pneg %p110
        $region26: #{interpolation_forward.3} parent=11 // pred_check_branch
          %208 = sbr.rel (%p206) target = $region28
        $region27: #{interpolation_forward.3} parent=11 // pred_region
          %s210 = ssub.s32 16, 16
          %211 = vsyncadd [#allocation6], %s210
          %s213 = sshll.u32 %s3, 4
          %s214 = int_to_ptr.vmem [resolvable:$true] %s213
          %216 = dma.vmem_to_smem %s214, 16, [#allocation7], [#allocation6]
        $region28: #{interpolation_forward.3} parent=11 // pred_fallthru
          _
      $region12: #{interpolation_forward.3} parent=5 // pred_fallthru
        _
      %p217 = scmp.lt.s32.totalorder %s14, 2
      // Predicated region
      $region29: #{interpolation_forward.3} parent=5 // pred_check
        %p218 = pneg %p217
      $region30: #{interpolation_forward.3} parent=5 // pred_check_branch
        %220 = sbr.rel (%p218) target = $region32
      $region31: #{interpolation_forward.3} parent=5 // pred_region
        // Predicated region
        $region33: #{interpolation_forward.3} parent=31 // pred_check
          %p221 = pneg %p132
        $region34: #{interpolation_forward.3} parent=31 // pred_check_branch
          %223 = sbr.rel (%p221) target = $region36
        $region35: #{interpolation_forward.3} parent=31 // pred_region
          %s224 = smul.u32 2, %s22
          %p225 = scmp.lt.s32.totalorder %s21, 1
          %s226 = scalar_select %p225, %s21, 1
          %p227 = scmp.lt.s32.totalorder %s224, 1
          %s228 = scalar_select %p227, %s224, 1
          %s229 = smul.addr %s226, 2
          %s230 = sadd.s32 %s228, %s229
          %s231 = smul.addr %s230, 4
          %s232 = scalar_lea.vmem %s4, %s231
          %s233 = smul.u32 2, %s22
        $region36: #{interpolation_forward.3} parent=31 // pred_fallthru
          _
      $region32: #{interpolation_forward.3} parent=5 // pred_fallthru
        _
      %p234 = scmp.le.s32.totalorder 1, %s14
      %p235 = scmp.lt.s32.totalorder %s14, 3
      %p236 = pnand %p234, %p235
      %p237 = pneg %p236
      // Predicated region
      $region37: #{interpolation_forward.3} parent=5 // pred_check
        _
      $region38: #{interpolation_forward.3} parent=5 // pred_check_branch
        %239 = sbr.rel (%p236) target = $region40
      $region39: #{interpolation_forward.3} parent=5 // pred_region
        %s240 = ssub.s32 %s14, 1
        // Predicated region
        $region41: #{interpolation_forward.3} parent=39 // pred_check
          %p241 = pneg %p47
        $region42: #{interpolation_forward.3} parent=39 // pred_check_branch
          %243 = sbr.rel (%p241) target = $region44
        $region43: #{interpolation_forward.3} parent=39 // pred_region
          %244 = dma.done [#allocation4], 16
        $region44: #{interpolation_forward.3} parent=39 // pred_fallthru
          _
        // Predicated region
        $region45: #{interpolation_forward.3} parent=39 // pred_check
          %p245 = pneg %p89
        $region46: #{interpolation_forward.3} parent=39 // pred_check_branch
          %247 = sbr.rel (%p245) target = $region48
        $region47: #{interpolation_forward.3} parent=39 // pred_region
          %248 = dma.done [#allocation6], 64
        $region48: #{interpolation_forward.3} parent=39 // pred_fallthru
          _
        // Predicated region
        $region49: #{interpolation_forward.3} parent=39 // pred_check
          %p249 = pneg %p110
        $region50: #{interpolation_forward.3} parent=39 // pred_check_branch
          %251 = sbr.rel (%p249) target = $region52
        $region51: #{interpolation_forward.3} parent=39 // pred_region
          %252 = dma.done [#allocation6], 16
        $region52: #{interpolation_forward.3} parent=39 // pred_fallthru
          _
        %253 = sfence
        %p254 = pneg %p47
        %p255 = pneg %p44
        %p256 = pneg %p68
        %p257 = pneg %p65
        %p258 = pneg %p89
        %p259 = pneg %p86
        %p260 = pneg %p110
        %p261 = pneg %p107
        %s262 = smul.u32 2, %s24
        %p263 = scmp.lt.s32.totalorder %s23, 1
        %s264 = scalar_select %p263, %s23, 1
        %p265 = scmp.lt.s32.totalorder %s262, 1
        %s266 = scalar_select %p265, %s262, 1
        %s267 = smul.addr %s264, 2
        %s268 = sadd.s32 %s266, %s267
        %s269 = smul.addr %s268, 4
        %s270 = scalar_lea.vmem %s4, %s269
        %p271 = pneg %p138
        %p272 = pneg %p135
        %p273 = pneg %p166
        %p274 = pneg %p163
        %s275 = smul.u32 2, %s24
        %p276 = scmp.lt.s32.totalorder %s23, 1
        %s277 = scalar_select %p276, %s23, 1
        %p278 = scmp.lt.s32.totalorder %s275, 1
        %s279 = scalar_select %p278, %s275, 1
        %s280 = smul.addr %s277, 2
        %s281 = sadd.s32 %s279, %s280
        %s282 = smul.addr %s281, 4
        %s283 = scalar_lea.vmem %s5, %s282
        %s284 = smul.u32 2, %s24
        %p285 = scmp.lt.s32.totalorder %s23, 1
        %s286 = scalar_select %p285, %s23, 1
        %p287 = scmp.lt.s32.totalorder %s284, 1
        %s288 = scalar_select %p287, %s284, 1
        %s289 = smul.addr %s286, 2
        %s290 = sadd.s32 %s288, %s289
        %s291 = smul.addr %s290, 4
        %s292 = scalar_lea.vmem %s4, %s291
        %s293 = smul.u32 2, %s24
        %s294 = smul.u32 2, %s24
        %p295 = scmp.lt.s32.totalorder %s23, 1
        %s296 = scalar_select %p295, %s23, 1
        %p297 = scmp.lt.s32.totalorder %s294, 1
        %s298 = scalar_select %p297, %s294, 1
        %s299 = smul.addr %s296, 2
        %s300 = sadd.s32 %s298, %s299
        %s301 = smul.addr %s300, 4
        %s302 = scalar_lea.vmem %s5, %s301
        %s303 = smul.u32 2, %s24
        %v304 = vld [vmem:[%s292] sm:$0xff]
        %s305 = sld [smem:[#allocation3]]
        %v306 = vstv %s305
        %v307 = vmul.f32 %v306, %v304
        %s308 = sld [smem:[#allocation2]]
        %v309 = vstv %s308
        %v310 = vadd.f32 %v307, %v309
        %s311 = sld [smem:[#allocation3 + $0x1]]
        %v312 = vstv %s311
        %v313 = vmul.f32 %v312, %v304
        %v315 = vrot.slane %v313, 5
        %v316 = vrot.slane %v315, 4
        %v318 = vadd.f32 %v310, %v316
        %s319 = sld [smem:[#allocation3 + $0x2]]
        %v320 = vstv %s319
        %v321 = vmul.f32 %v320, %v304
        %v323 = vrot.slane %v321, 6
        %v324 = vrot.slane %v323, 4
        %v326 = vadd.f32 %v318, %v324
        %s327 = sld [smem:[#allocation3 + $0x3]]
        %v328 = vstv %s327
        %v329 = vmul.f32 %v328, %v304
        %v331 = vrot.slane %v329, 7
        %v332 = vrot.slane %v331, 4
        %v334 = vadd.f32 %v326, %v332
        %v335 = vmax.f32 %v334, 0.0
        %s336 = sld [smem:[#allocation5]]
        %v337 = vstv %s336
        %v338 = vmul.f32 %v337, %v335
        %s339 = sld [smem:[#allocation7]]
        %v340 = vstv %s339
        %v341 = vadd.f32 %v338, %v340
        %s342 = sld [smem:[#allocation5 + $0x80]]
        %v343 = vstv %s342
        %v344 = vmul.f32 %v343, %v335
        %s345 = sld [smem:[#allocation7 + $0x1]]
        %v346 = vstv %s345
        %v347 = vadd.f32 %v344, %v346
        %s348 = sld [smem:[#allocation5 + $0x100]]
        %v349 = vstv %s348
        %v350 = vmul.f32 %v349, %v335
        %s351 = sld [smem:[#allocation7 + $0x2]]
        %v352 = vstv %s351
        %v353 = vadd.f32 %v350, %v352
        %s354 = sld [smem:[#allocation5 + $0x180]]
        %v355 = vstv %s354
        %v356 = vmul.f32 %v355, %v335
        %s357 = sld [smem:[#allocation7 + $0x3]]
        %v358 = vstv %s357
        %v359 = vadd.f32 %v356, %v358
        %v361 = vlaneseq
        %v362 = vshrl.u32 %v361, 7
        %v363 = vsub.s32 0, %v362
        %v364 = vrot.slane %v341, %v363
        %v365 = vlaneseq
        %v366 = vshrl.u32 %v365, 7
        %v367 = vsub.s32 4, %v366
        %v368 = vrot.slane %v341, %v367
        %v372 = vlaneseq
        %v373 = vshrl.u32 %v372, 7
        %v374 = vsub.s32 0, %v373
        %v375 = vrot.slane %v347, %v374
        %v376 = vlaneseq
        %v377 = vshrl.u32 %v376, 7
        %v378 = vsub.s32 4, %v377
        %v379 = vrot.slane %v347, %v378
        %v383 = vlaneseq
        %v384 = vshrl.u32 %v383, 7
        %v385 = vsub.s32 0, %v384
        %v386 = vrot.slane %v353, %v385
        %v387 = vlaneseq
        %v388 = vshrl.u32 %v387, 7
        %v389 = vsub.s32 4, %v388
        %v390 = vrot.slane %v353, %v389
        %v394 = vlaneseq
        %v395 = vshrl.u32 %v394, 7
        %v396 = vsub.s32 0, %v395
        %v397 = vrot.slane %v359, %v396
        %v398 = vlaneseq
        %v399 = vshrl.u32 %v398, 7
        %v400 = vsub.s32 4, %v399
        %v401 = vrot.slane %v359, %v400
        %vm404 = vcmask 1040384
        %v405 = vsel %vm404, %v364, %v375
        %v406 = vsel %vm404, %v368, %v379
        %vm407 = vcmask 1041408
        %v408 = vsel %vm407, %v405, %v386
        %v409 = vsel %vm407, %v406, %v390
        %vm410 = vcmask 1042432
        %v411 = vsel %vm410, %v408, %v397
        %v412 = vsel %vm410, %v409, %v401
        %vm413 = vcmask 1043456
        %v414 = vsel %vm413, %v411, -inf
        %v415 = vrot.slane %v414, 4
        %v416 = vmax.f32 %v414, %v415
        %v417 = vrot.slane %v416, 2
        %v418 = vmax.f32 %v416, %v417
        %v419 = vrot.slane %v418, 1
        %v420 = vmax.f32 %v418, %v419
        %v421 = vsel %vm413, %v412, -inf
        %v422 = vrot.slane %v421, 4
        %v423 = vmax.f32 %v421, %v422
        %v424 = vrot.slane %v423, 2
        %v425 = vmax.f32 %v423, %v424
        %v426 = vrot.slane %v425, 1
        %v427 = vmax.f32 %v425, %v426
        %v428 = vsub.f32 %v411, %v420
        %v429 = vsub.f32 %v412, %v427
        %v430 = vmul.f32 %v428, 1.442695
        %v431 = vpow.pop %v430
        %v432 = vmul.f32 %v429, 1.442695
        %v433 = vpow.pop %v432
        %v434 = vsel %vm413, %v431, 0.0
        %v435 = vrot.slane %v434, 4
        %v436 = vadd.f32 %v434, %v435
        %v437 = vrot.slane %v436, 2
        %v438 = vadd.f32 %v436, %v437
        %v439 = vrot.slane %v438, 1
        %v440 = vadd.f32 %v438, %v439
        %v441 = vsel %vm413, %v433, 0.0
        %v442 = vrot.slane %v441, 4
        %v443 = vadd.f32 %v441, %v442
        %v444 = vrot.slane %v443, 2
        %v445 = vadd.f32 %v443, %v444
        %v446 = vrot.slane %v445, 1
        %v447 = vadd.f32 %v445, %v446
        %v448 = vrcp.pop %v440
        %v449 = vrcp.pop %v447
        %v450 = vmul.f32 %v431, %v448
        %v451 = vmul.f32 %v433, %v449
        %v454 = vcombine.low %v450, %v451
        %v456 = vmul.f32 %v304, %v454
        %457 = vst [vmem:[%s302] sm:$0xff] %v456
        %s458 = smul.u32 2, %s24
        %p459 = scmp.lt.s32.totalorder %s23, 1
        %s460 = scalar_select %p459, %s23, 1
        %p461 = scmp.lt.s32.totalorder %s458, 1
        %s462 = scalar_select %p461, %s458, 1
        %s463 = smul.addr %s460, 2
        %s464 = sadd.s32 %s462, %s463
        %s465 = smul.addr %s464, 4
        %s466 = scalar_lea.vmem %s5, %s465
        // Predicated region
        $region53: #{interpolation_forward.3} parent=39 // pred_check
          %p467 = pneg %p163
        $region54: #{interpolation_forward.3} parent=39 // pred_check_branch
          %469 = sbr.rel (%p467) target = $region56
        $region55: #{interpolation_forward.3} parent=39 // pred_region
          %s470 = smul.u32 2, %s24
        $region56: #{interpolation_forward.3} parent=39 // pred_fallthru
          _
      $region40: #{interpolation_forward.3} parent=5 // pred_fallthru
        _
      %p471 = scmp.le.s32.totalorder 2, %s14
      // Predicated region
      $region57: #{interpolation_forward.3} parent=5 // pred_check
        %p472 = pneg %p471
      $region58: #{interpolation_forward.3} parent=5 // pred_check_branch
        %474 = sbr.rel (%p472) target = $region60
      $region59: #{interpolation_forward.3} parent=5 // pred_region
        %s475 = ssub.s32 %s14, 2
        // Predicated region
        $region61: #{interpolation_forward.3} parent=59 // pred_check
          %p476 = pneg %p169
        $region62: #{interpolation_forward.3} parent=59 // pred_check_branch
          %478 = sbr.rel (%p476) target = $region64
        $region63: #{interpolation_forward.3} parent=59 // pred_region
          %s479 = smul.u32 2, %s26
          %p480 = scmp.lt.s32.totalorder %s25, 1
          %s481 = scalar_select %p480, %s25, 1
          %p482 = scmp.lt.s32.totalorder %s479, 1
          %s483 = scalar_select %p482, %s479, 1
          %s484 = smul.addr %s481, 2
          %s485 = sadd.s32 %s483, %s484
          %s486 = smul.addr %s485, 4
          %s487 = scalar_lea.vmem %s5, %s486
        $region64: #{interpolation_forward.3} parent=59 // pred_fallthru
          _
      $region60: #{interpolation_forward.3} parent=5 // pred_fallthru
        _
    $region6: #{interpolation_forward.3} parent=1 // loop_footer
      %s18 = sadd.s32 1, %s14
    $region7: #{interpolation_forward.3} parent=1 // loop_footer_branch
      %13 = sbr.rel target = $region3
    $region8: #{interpolation_forward.3} parent=1 // loop_exit
      _
    %488 = vsyncpa [#allocation4], 1
    %s489 = scalar_lea.sflag [#allocation4], 1
    %490 = vsyncpa %s489, 1
    %491 = vsyncpa [#allocation6], 1

</llo_original>
